<compile_context>
chip_gen: v7x
topology: tpu7x:2x2x1
jax: 0.10.0
libtpu: 0.0.40
codegen_flags: <defaults>
</compile_context>

<pallas_src>
import functools

import numpy as np
import jax
import jax.numpy as jnp
from jax import lax
from jax.experimental import pallas as pl
from jax.experimental.pallas import tpu as pltpu


_LOWBIAS_C1 = 0x7FEB352D   # lowbias32 mixing constants
_LOWBIAS_C2 = 0x846CA68B
_GOLDEN = 0x9E3779B9       # seed mixing constant


def _to_i32(v: int) -> int:
    """Python int -> the same 32-bit pattern as a signed int32."""
    v &= 0xFFFFFFFF
    return v - (1 << 32) if v >= (1 << 31) else v


def _round_up(x: int, m: int) -> int:
    return ((x + m - 1) // m) * m


def _srl32(x, n: int):
    """Logical right shift for int32 values (mask off sign-extension bits)."""
    mask = (1 << (32 - n)) - 1
    return (x >> n) & jnp.int32(mask)


def _softmax_scaled(x_ref, keep_p: float):
    """softmax(x, axis=-1) / keep_p computed in f32 (1/keep_p folded into denom)."""
    x = x_ref[...].astype(jnp.float32)
    x_max = jnp.max(x, axis=-1, keepdims=True)
    e = jnp.exp(x - x_max)
    denom = jnp.sum(e, axis=-1, keepdims=True)
    return e / (denom * jnp.float32(keep_p))


def _combined_nodrop_kernel(x_ref, m_ref, o_ref):
    """p == 0 fast path: softmax(x) * m, no RNG, no select."""
    soft = _softmax_scaled(x_ref, 1.0)
    out = soft * m_ref[...].astype(jnp.float32)
    o_ref[...] = out.astype(o_ref.dtype)


def _combined_dropout_kernel(x_ref, m_ref, o_ref, *,
                             seed_mix, keep_thresh24, keep_p, n_cols, row_tile):
    """Fused softmax(axis=-1) -> dropout(keep_p, scaled) -> elementwise multiply."""
    soft = _softmax_scaled(x_ref, keep_p)          # already scaled by 1/keep_p

    # Stateless per-element hash RNG (lowbias32) keyed on the GLOBAL element
    # index, so the mask is deterministic and independent of the row tiling.
    shape = x_ref.shape
    row0 = pl.program_id(0) * row_tile
    rows = lax.broadcasted_iota(jnp.int32, shape, 0) + row0
    cols = lax.broadcasted_iota(jnp.int32, shape, 1)
    h = rows * jnp.int32(n_cols) + cols            # wraps mod 2^32: fine for a hash
    h = h ^ jnp.int32(seed_mix)
    h = h ^ _srl32(h, 16)
    h = h * jnp.int32(_to_i32(_LOWBIAS_C1))
    h = h ^ _srl32(h, 15)
    h = h * jnp.int32(_to_i32(_LOWBIAS_C2))
    h = h ^ _srl32(h, 16)
    # keep iff low-24-bit uniform < keep_p * 2^24
    keep = (h & jnp.int32(0x00FFFFFF)) < jnp.int32(keep_thresh24)

    out = jnp.where(keep, soft, jnp.float32(0.0)) * m_ref[...].astype(jnp.float32)
    o_ref[...] = out.astype(o_ref.dtype)


def combined_forward(softmax_inp, mult_inp2, *, dim, p_drop, seed,
                     target_block_elems=256 * 1024):
    """JAX wrapper reproducing Combined(dim, p).forward(softmax_inp, mult_inp2)."""
    keep_p = 1.0 - float(p_drop)
    if not (0.0 < keep_p <= 1.0):
        raise ValueError("dropout probability must be in [0, 1)")
    out_dtype = jnp.result_type(softmax_inp.dtype, mult_inp2.dtype)

    # Glue: move softmax axis to the lane dim, flatten to 2-D (native dtype --
    # no f32 up-cast of the HBM streams).
    x = jnp.moveaxis(softmax_inp, dim, -1)
    m = jnp.moveaxis(mult_inp2, dim, -1)
    lead_shape = x.shape[:-1]
    C = x.shape[-1]
    R = int(np.prod(lead_shape)) if lead_shape else 1
    x2 = x.reshape(R, C)
    m2 = m.reshape(R, C)

    # Row tile: this kernel is HBM-bandwidth bound, so pick the biggest block
    # (a multiple of 8 rows) whose f32 working set is ~1 MiB.  With 3 streams
    # x 2 pipeline buffers plus in-kernel temporaries this stays comfortably
    # inside every generation's scoped VMEM (v5e 16 MiB default ... v7x 64 MiB
    # physical) while reaching ~85% of HBM roofline per measured Pallas data.
    # TODO(synk): for very large C (long-seq attention) switch to a flash-style
    # online softmax over column chunks instead of one full row per block.
    # TODO(synk): for C < 128 the lanes are under-filled; folding several rows
    # into the lane dim would make stores lane-dense.
    row_tile = max(8, (target_block_elems // max(C, 1)) // 8 * 8)
    row_tile = min(row_tile, _round_up(R, 8))
    R_pad = _round_up(R, row_tile)
    if R_pad != R:
        # Pad rows instead of collapsing the grid into one giant block.
        x2 = jnp.pad(x2, ((0, R_pad - R), (0, 0)))
        m2 = jnp.pad(m2, ((0, R_pad - R), (0, 0)))

    if keep_p >= 1.0:
        kernel = _combined_nodrop_kernel
    else:
        kernel = functools.partial(
            _combined_dropout_kernel,
            seed_mix=_to_i32(int(seed) * _GOLDEN),
            keep_thresh24=min(int(keep_p * (1 << 24)), (1 << 24) - 1),
            keep_p=keep_p,
            n_cols=C,
            row_tile=row_tile,
        )

    out2 = pl.pallas_call(
        kernel,
        out_shape=jax.ShapeDtypeStruct((R_pad, C), out_dtype),
        grid=(R_pad // row_tile,),
        in_specs=[
            pl.BlockSpec((row_tile, C), lambda i: (i, 0)),
            pl.BlockSpec((row_tile, C), lambda i: (i, 0)),
        ],
        out_specs=pl.BlockSpec((row_tile, C), lambda i: (i, 0)),
        compiler_params=pltpu.CompilerParams(
            # Rows are embarrassingly parallel -> lets v7x shard over its 2 TCs.
            dimension_semantics=("parallel",),
            vmem_limit_bytes=48 << 20,
        ),
    )(x2, m2)

    out = out2[:R].reshape(lead_shape + (C,))
    return jnp.moveaxis(out, -1, dim)


# TODO(synk): only the forward pass is implemented; the module's custom
# autograd backward (combined.backward) is not needed for inference.


def _host_keep_mask(shape, dim, keep_p, seed):
    """NumPy replica of the kernel's stateless lowbias32 dropout mask."""
    nd = len(shape)
    ax = dim % nd
    moved = shape[:ax] + shape[ax + 1:] + (shape[ax],)
    C = moved[-1]
    R = int(np.prod(moved[:-1])) if len(moved) > 1 else 1
    h = np.arange(R * C, dtype=np.uint32).reshape(R, C)
    h = h ^ np.uint32((int(seed) * _GOLDEN) & 0xFFFFFFFF)
    h = h ^ (h >> np.uint32(16))
    h = (h * np.uint32(_LOWBIAS_C1)).astype(np.uint32)
    h = h ^ (h >> np.uint32(15))
    h = (h * np.uint32(_LOWBIAS_C2)).astype(np.uint32)
    h = h ^ (h >> np.uint32(16))
    thresh = np.uint32(min(int(keep_p * (1 << 24)), (1 << 24) - 1))
    keep = (h & np.uint32(0x00FFFFFF)) < thresh
    return np.moveaxis(keep.reshape(moved), -1, ax)


if __name__ == "__main__":
    # Module config: Combined(dim=-1, p=0.1)
    dim = -1
    p_drop = 0.1
    seed = 1234

    key = jax.random.PRNGKey(0)
    k1, k2 = jax.random.split(key)
    # Attention-score-like shapes: (batch=2, heads=4, seq=8, hidden=32)
    shape = (2, 4, 8, 32)
    softmax_inp = jax.random.normal(k1, shape, dtype=jnp.float32)
    mult_inp2 = jax.random.normal(k2, shape, dtype=jnp.float32)

    out = combined_forward(softmax_inp, mult_inp2, dim=dim, p_drop=p_drop, seed=seed)
    out = jax.block_until_ready(out)
    assert out.shape == shape

    # Exact reference (including the deterministic dropout mask).
    keep_p = 1.0 - p_drop
    soft = np.asarray(jax.nn.softmax(softmax_inp, axis=dim), dtype=np.float64)
    m_np = np.asarray(mult_inp2, dtype=np.float64)
    keep = _host_keep_mask(shape, dim, keep_p, seed)
    expected = np.where(keep, soft / keep_p * m_np, 0.0)

    out_np = np.asarray(out, dtype=np.float64)
    assert np.all(np.isfinite(out_np))
    np.testing.assert_allclose(out_np, expected, rtol=1e-4, atol=1e-6)

    # p = 0 (no dropout) fast path: must be exactly softmax(x) * m.
    out0 = jax.block_until_ready(
        combined_forward(softmax_inp, mult_inp2, dim=dim, p_drop=0.0, seed=seed))
    np.testing.assert_allclose(np.asarray(out0, dtype=np.float64),
                               soft * m_np, rtol=1e-4, atol=1e-6)

    print("KERNEL_OK")
</pallas_src>

<mosaic_0001>
module attributes {stable_mosaic.version = 11 : i64} {
  func.func @_combined_dropout_kernel(%arg0: i32, %arg1: memref<64x32xf32, #tpu.memory_space<vmem>>, %arg2: memref<64x32xf32, #tpu.memory_space<vmem>>, %arg3: memref<64x32xf32, #tpu.memory_space<vmem>>) attributes {dimension_semantics = [#tpu.dimension_semantics<parallel>], iteration_bounds = array<i64: 1>, scalar_prefetch = 0 : i64, scratch_operands = 0 : i64, tpu.core_type = #tpu.core_type<tc>, window_params = [{transform_indices = @transform_0, window_bounds = array<i64: 64, 32>}, {transform_indices = @transform_1, window_bounds = array<i64: 64, 32>}, {transform_indices = @transform_2, window_bounds = array<i64: 64, 32>}]} {
    %c0 = arith.constant 0 : index
    %c0_0 = arith.constant 0 : index
    %0 = vector.load %arg1[%c0, %c0_0] : memref<64x32xf32, #tpu.memory_space<vmem>>, vector<64x32xf32>
    %cst = arith.constant dense<0xFF800000> : vector<64xf32>
    %1 = vector.multi_reduction <maximumf>, %0, %cst [1] : vector<64x32xf32> to vector<64xf32>
    %2 = vector.shape_cast %1 : vector<64xf32> to vector<64x1xf32>
    %3 = vector.broadcast %2 : vector<64x1xf32> to vector<64x32xf32>
    %4 = arith.subf %0, %3 : vector<64x32xf32>
    %5 = math.exp %4 : vector<64x32xf32>
    %cst_1 = arith.constant dense<0.000000e+00> : vector<64xf32>
    %6 = vector.multi_reduction <add>, %5, %cst_1 [1] : vector<64x32xf32> to vector<64xf32>
    %7 = vector.shape_cast %6 : vector<64xf32> to vector<64x1xf32>
    %cst_2 = arith.constant 0.899999976 : f32
    %8 = vector.broadcast %cst_2 : f32 to vector<64x1xf32>
    %9 = arith.mulf %7, %8 : vector<64x1xf32>
    %10 = vector.broadcast %9 : vector<64x1xf32> to vector<64x32xf32>
    %11 = arith.divf %5, %10 : vector<64x32xf32>
    %c64_i32 = arith.constant 64 : i32
    %12 = arith.muli %arg0, %c64_i32 : i32
    %13 = tpu.iota {dimensions = array<i32: 0>} : vector<64x32xi32>
    %14 = vector.broadcast %12 : i32 to vector<64x32xi32>
    %15 = arith.addi %13, %14 : vector<64x32xi32>
    %16 = tpu.iota {dimensions = array<i32: 1>} : vector<64x32xi32>
    %c32_i32 = arith.constant 32 : i32
    %17 = vector.broadcast %c32_i32 : i32 to vector<64x32xi32>
    %18 = arith.muli %15, %17 : vector<64x32xi32>
    %19 = arith.addi %18, %16 : vector<64x32xi32>
    %c-1486307902_i32 = arith.constant -1486307902 : i32
    %20 = vector.broadcast %c-1486307902_i32 : i32 to vector<64x32xi32>
    %21 = arith.xori %19, %20 : vector<64x32xi32>
    %c16_i32 = arith.constant 16 : i32
    %22 = vector.broadcast %c16_i32 : i32 to vector<64x32xi32>
    %23 = arith.shrsi %21, %22 : vector<64x32xi32>
    %c65535_i32 = arith.constant 65535 : i32
    %24 = vector.broadcast %c65535_i32 : i32 to vector<64x32xi32>
    %25 = arith.andi %23, %24 : vector<64x32xi32>
    %26 = arith.xori %21, %25 : vector<64x32xi32>
    %c2146121005_i32 = arith.constant 2146121005 : i32
    %27 = vector.broadcast %c2146121005_i32 : i32 to vector<64x32xi32>
    %28 = arith.muli %26, %27 : vector<64x32xi32>
    %c15_i32 = arith.constant 15 : i32
    %29 = vector.broadcast %c15_i32 : i32 to vector<64x32xi32>
    %30 = arith.shrsi %28, %29 : vector<64x32xi32>
    %c131071_i32 = arith.constant 131071 : i32
    %31 = vector.broadcast %c131071_i32 : i32 to vector<64x32xi32>
    %32 = arith.andi %30, %31 : vector<64x32xi32>
    %33 = arith.xori %28, %32 : vector<64x32xi32>
    %c-2073254261_i32 = arith.constant -2073254261 : i32
    %34 = vector.broadcast %c-2073254261_i32 : i32 to vector<64x32xi32>
    %35 = arith.muli %33, %34 : vector<64x32xi32>
    %c16_i32_3 = arith.constant 16 : i32
    %36 = vector.broadcast %c16_i32_3 : i32 to vector<64x32xi32>
    %37 = arith.shrsi %35, %36 : vector<64x32xi32>
    %c65535_i32_4 = arith.constant 65535 : i32
    %38 = vector.broadcast %c65535_i32_4 : i32 to vector<64x32xi32>
    %39 = arith.andi %37, %38 : vector<64x32xi32>
    %40 = arith.xori %35, %39 : vector<64x32xi32>
    %c16777215_i32 = arith.constant 16777215 : i32
    %41 = vector.broadcast %c16777215_i32 : i32 to vector<64x32xi32>
    %42 = arith.andi %40, %41 : vector<64x32xi32>
    %c15099494_i32 = arith.constant 15099494 : i32
    %43 = vector.broadcast %c15099494_i32 : i32 to vector<64x32xi32>
    %44 = arith.cmpi slt, %42, %43 : vector<64x32xi32>
    %cst_5 = arith.constant 0.000000e+00 : f32
    %45 = vector.broadcast %cst_5 : f32 to vector<64x32xf32>
    %46 = arith.select %44, %11, %45 : vector<64x32xi1>, vector<64x32xf32>
    %c0_6 = arith.constant 0 : index
    %c0_7 = arith.constant 0 : index
    %47 = vector.load %arg2[%c0_6, %c0_7] : memref<64x32xf32, #tpu.memory_space<vmem>>, vector<64x32xf32>
    %48 = arith.mulf %46, %47 : vector<64x32xf32>
    %c0_8 = arith.constant 0 : index
    %c0_9 = arith.constant 0 : index
    %49 = vector.load %arg3[%c0_8, %c0_9] : memref<64x32xf32, #tpu.memory_space<vmem>>, vector<64x32xf32>
    tpu.vector_store %arg3[%c0_8, %c0_9], %48 {strides = array<i32>} : memref<64x32xf32, #tpu.memory_space<vmem>>, vector<64x32xf32>,
    return
  }
  func.func @transform_0(%arg0: i32) -> (i32, i32) {
    %c0_i32 = arith.constant 0 : i32
    %c0_i32_0 = arith.constant 0 : i32
    return %arg0, %c0_i32 : i32, i32
  }
  func.func @transform_1(%arg0: i32) -> (i32, i32) {
    %c0_i32 = arith.constant 0 : i32
    %c0_i32_0 = arith.constant 0 : i32
    return %arg0, %c0_i32 : i32, i32
  }
  func.func @transform_2(%arg0: i32) -> (i32, i32) {
    %c0_i32 = arith.constant 0 : i32
    %c0_i32_0 = arith.constant 0 : i32
    return %arg0, %c0_i32 : i32, i32
  }
}

</mosaic_0001>

<llo_original>
// kernel: tpu_custom_call.1
$region0: #{tpu_custom_call.1}
  #allocation0 [shape = 'u32[]', space=smem, size = 0x4, offset = 0x4, fixed_abs, tag = 'smem constant byte address 0x4 - core index']
  #allocation1 [shape = 'u32[144,128]{1,0:T(1,128)}', space=vmem, size = 0x12000, scoped, tag = 'internal scratch']
  %s0 = inlined_call_operand.vmem [shape: f32[64,32], index: 0, kind: input, shape index: {}]
  %s1 = inlined_call_operand.vmem [shape: f32[64,32], index: 1, kind: input, shape index: {}]
  %s2 = inlined_call_operand.vmem [shape: f32[64,32], index: 2, kind: output, shape index: {}]
  %s3 = sld [smem:[#allocation0]]
  $region18: #{tpu_custom_call.1} parent=0
    _
  %s5 = ssub.s32 1, %s3
  %s6 = scalar_select 0, %s5, %s3
  // Predicated region
  $region2: #{tpu_custom_call.1} parent=0 // pred_check
    _
  $region3: #{tpu_custom_call.1} parent=0 // pred_check_branch
    %8 = sbr.rel (0) target = $region5
  $region4: #{tpu_custom_call.1} parent=0 // pred_region
    _
  $region5: #{tpu_custom_call.1} parent=0 // pred_fallthru
    _
  // Predicated region
  $region6: #{tpu_custom_call.1} parent=0 // pred_check
    _
  $region7: #{tpu_custom_call.1} parent=0 // pred_check_branch
    %10 = sbr.rel (0) target = $region9
  $region8: #{tpu_custom_call.1} parent=0 // pred_region
    _
  $region9: #{tpu_custom_call.1} parent=0 // pred_fallthru
    _
  %v11 = vld [vmem:[%s0] sm:$0xff]
  %v12 = vld [vmem:[%s0 + $0x8] sm:$0xff]
  %v13 = vld [vmem:[%s0 + $0x10] sm:$0xff]
  %v14 = vld [vmem:[%s0 + $0x18] sm:$0xff]
  %v15 = vld [vmem:[%s0 + $0x20] sm:$0xff]
  %v16 = vld [vmem:[%s0 + $0x28] sm:$0xff]
  %v17 = vld [vmem:[%s0 + $0x30] sm:$0xff]
  %v18 = vld [vmem:[%s0 + $0x38] sm:$0xff]
  %vm19 = vcmask 261120
  %v20 = vsel %vm19, %v11, -inf
  %21 = vmax.xlane.f32.xlu0 %v20
  %v22 = vpop.xlane.xlu0 %21
  %v23 = vsel %vm19, %v12, -inf
  %24 = vmax.xlane.f32.xlu0 %v23
  %v25 = vpop.xlane.xlu0 %24
  %v26 = vsel %vm19, %v13, -inf
  %27 = vmax.xlane.f32.xlu0 %v26
  %v28 = vpop.xlane.xlu0 %27
  %v29 = vsel %vm19, %v14, -inf
  %30 = vmax.xlane.f32.xlu0 %v29
  %v31 = vpop.xlane.xlu0 %30
  %v32 = vsel %vm19, %v15, -inf
  %33 = vmax.xlane.f32.xlu0 %v32
  %v34 = vpop.xlane.xlu0 %33
  %v35 = vsel %vm19, %v16, -inf
  %36 = vmax.xlane.f32.xlu0 %v35
  %v37 = vpop.xlane.xlu0 %36
  %v38 = vsel %vm19, %v17, -inf
  %39 = vmax.xlane.f32.xlu0 %v38
  %v40 = vpop.xlane.xlu0 %39
  %v41 = vsel %vm19, %v18, -inf
  %42 = vmax.xlane.f32.xlu0 %v41
  %v43 = vpop.xlane.xlu0 %42
  %v44 = vsub.f32 %v11, %v22
  %v45 = vsub.f32 %v12, %v25
  %v46 = vsub.f32 %v13, %v28
  %v47 = vsub.f32 %v14, %v31
  %v48 = vsub.f32 %v15, %v34
  %v49 = vsub.f32 %v16, %v37
  %v50 = vsub.f32 %v17, %v40
  %v51 = vsub.f32 %v18, %v43
  %v52 = vmul.f32 %v44, 1.442695
  %v53 = vpow.pop %v52
  %v54 = vmul.f32 %v45, 1.442695
  %v55 = vpow.pop %v54
  %v56 = vmul.f32 %v46, 1.442695
  %v57 = vpow.pop %v56
  %v58 = vmul.f32 %v47, 1.442695
  %v59 = vpow.pop %v58
  %v60 = vmul.f32 %v48, 1.442695
  %v61 = vpow.pop %v60
  %v62 = vmul.f32 %v49, 1.442695
  %v63 = vpow.pop %v62
  %v64 = vmul.f32 %v50, 1.442695
  %v65 = vpow.pop %v64
  %v66 = vmul.f32 %v51, 1.442695
  %v67 = vpow.pop %v66
  %v68 = vsel %vm19, %v53, 0.0
  %69 = vadd.xlane.f32.xlu0 %v68
  %v70 = vpop.xlane.xlu0 %69
  %v71 = vsel %vm19, %v55, 0.0
  %72 = vadd.xlane.f32.xlu0 %v71
  %v73 = vpop.xlane.xlu0 %72
  %v74 = vsel %vm19, %v57, 0.0
  %75 = vadd.xlane.f32.xlu0 %v74
  %v76 = vpop.xlane.xlu0 %75
  %v77 = vsel %vm19, %v59, 0.0
  %78 = vadd.xlane.f32.xlu0 %v77
  %v79 = vpop.xlane.xlu0 %78
  %v80 = vsel %vm19, %v61, 0.0
  %81 = vadd.xlane.f32.xlu0 %v80
  %v82 = vpop.xlane.xlu0 %81
  %v83 = vsel %vm19, %v63, 0.0
  %84 = vadd.xlane.f32.xlu0 %v83
  %v85 = vpop.xlane.xlu0 %84
  %v86 = vsel %vm19, %v65, 0.0
  %87 = vadd.xlane.f32.xlu0 %v86
  %v88 = vpop.xlane.xlu0 %87
  %v89 = vsel %vm19, %v67, 0.0
  %90 = vadd.xlane.f32.xlu0 %v89
  %v91 = vpop.xlane.xlu0 %90
  %v92 = vmul.f32 %v70, 0.9
  %v93 = vmul.f32 %v73, 0.9
  %v94 = vmul.f32 %v76, 0.9
  %v95 = vmul.f32 %v79, 0.9
  %v96 = vmul.f32 %v82, 0.9
  %v97 = vmul.f32 %v85, 0.9
  %v98 = vmul.f32 %v88, 0.9
  %v99 = vmul.f32 %v91, 0.9
  %v100 = vrcp.pop %v92
  %v101 = vmul.f32 %v53, %v100
  %v102 = vrcp.pop %v93
  %v103 = vmul.f32 %v55, %v102
  %v104 = vrcp.pop %v94
  %v105 = vmul.f32 %v57, %v104
  %v106 = vrcp.pop %v95
  %v107 = vmul.f32 %v59, %v106
  %v108 = vrcp.pop %v96
  %v109 = vmul.f32 %v61, %v108
  %v110 = vrcp.pop %v97
  %v111 = vmul.f32 %v63, %v110
  %v112 = vrcp.pop %v98
  %v113 = vmul.f32 %v65, %v112
  %v114 = vrcp.pop %v99
  %v115 = vmul.f32 %v67, %v114
  %s116 = smul.u32 0, 64
  %v117 = vlaneseq
  %v118 = vshrl.u32 %v117, 7
  %v119 = vadd.s32 %v118, 8
  %v120 = vadd.s32 %v118, 16
  %v121 = vadd.s32 %v118, 24
  %v122 = vadd.s32 %v118, 32
  %v123 = vadd.s32 %v118, 40
  %v124 = vadd.s32 %v118, 48
  %v125 = vadd.s32 %v118, 56
  %v126 = vstv %s116
  %v127 = vadd.s32 %v118, %v126
  %v128 = vadd.s32 %v119, %v126
  %v129 = vadd.s32 %v120, %v126
  %v130 = vadd.s32 %v121, %v126
  %v131 = vadd.s32 %v122, %v126
  %v132 = vadd.s32 %v123, %v126
  %v133 = vadd.s32 %v124, %v126
  %v134 = vadd.s32 %v125, %v126
  %v135 = vlaneseq
  %v136 = vand.u32 %v135, 127
  %v137 = vmul.u32 %v127, 32
  %v138 = vmul.u32 %v128, 32
  %v139 = vmul.u32 %v129, 32
  %v140 = vmul.u32 %v130, 32
  %v141 = vmul.u32 %v131, 32
  %v142 = vmul.u32 %v132, 32
  %v143 = vmul.u32 %v133, 32
  %v144 = vmul.u32 %v134, 32
  %v145 = vadd.s32 %v137, %v136
  %v146 = vadd.s32 %v138, %v136
  %v147 = vadd.s32 %v139, %v136
  %v148 = vadd.s32 %v140, %v136
  %v149 = vadd.s32 %v141, %v136
  %v150 = vadd.s32 %v142, %v136
  %v151 = vadd.s32 %v143, %v136
  %v152 = vadd.s32 %v144, %v136
  %v153 = vxor.u32 %v145, 2808659394
  %v154 = vxor.u32 %v146, 2808659394
  %v155 = vxor.u32 %v147, 2808659394
  %v156 = vxor.u32 %v148, 2808659394
  %v157 = vxor.u32 %v149, 2808659394
  %v158 = vxor.u32 %v150, 2808659394
  %v159 = vxor.u32 %v151, 2808659394
  %v160 = vxor.u32 %v152, 2808659394
  %v161 = vshra.s32 %v153, 16
  %v162 = vshra.s32 %v154, 16
  %v163 = vshra.s32 %v155, 16
  %v164 = vshra.s32 %v156, 16
  %v165 = vshra.s32 %v157, 16
  %v166 = vshra.s32 %v158, 16
  %v167 = vshra.s32 %v159, 16
  %v168 = vshra.s32 %v160, 16
  %v169 = vand.u32 %v161, 65535
  %v170 = vand.u32 %v162, 65535
  %v171 = vand.u32 %v163, 65535
  %v172 = vand.u32 %v164, 65535
  %v173 = vand.u32 %v165, 65535
  %v174 = vand.u32 %v166, 65535
  %v175 = vand.u32 %v167, 65535
  %v176 = vand.u32 %v168, 65535
  %v177 = vxor.u32 %v153, %v169
  %v178 = vxor.u32 %v154, %v170
  %v179 = vxor.u32 %v155, %v171
  %v180 = vxor.u32 %v156, %v172
  %v181 = vxor.u32 %v157, %v173
  %v182 = vxor.u32 %v158, %v174
  %v183 = vxor.u32 %v159, %v175
  %v184 = vxor.u32 %v160, %v176
  %v185 = vmul.u32 %v177, 2146121005
  %v186 = vmul.u32 %v178, 2146121005
  %v187 = vmul.u32 %v179, 2146121005
  %v188 = vmul.u32 %v180, 2146121005
  %v189 = vmul.u32 %v181, 2146121005
  %v190 = vmul.u32 %v182, 2146121005
  %v191 = vmul.u32 %v183, 2146121005
  %v192 = vmul.u32 %v184, 2146121005
  %v193 = vshra.s32 %v185, 15
  %v194 = vshra.s32 %v186, 15
  %v195 = vshra.s32 %v187, 15
  %v196 = vshra.s32 %v188, 15
  %v197 = vshra.s32 %v189, 15
  %v198 = vshra.s32 %v190, 15
  %v199 = vshra.s32 %v191, 15
  %v200 = vshra.s32 %v192, 15
  %v201 = vand.u32 %v193, 131071
  %v202 = vand.u32 %v194, 131071
  %v203 = vand.u32 %v195, 131071
  %v204 = vand.u32 %v196, 131071
  %v205 = vand.u32 %v197, 131071
  %v206 = vand.u32 %v198, 131071
  %v207 = vand.u32 %v199, 131071
  %v208 = vand.u32 %v200, 131071
  %v209 = vxor.u32 %v185, %v201
  %v210 = vxor.u32 %v186, %v202
  %v211 = vxor.u32 %v187, %v203
  %v212 = vxor.u32 %v188, %v204
  %v213 = vxor.u32 %v189, %v205
  %v214 = vxor.u32 %v190, %v206
  %v215 = vxor.u32 %v191, %v207
  %v216 = vxor.u32 %v192, %v208
  %v217 = vmul.u32 %v209, 2221713035
  %v218 = vmul.u32 %v210, 2221713035
  %v219 = vmul.u32 %v211, 2221713035
  %v220 = vmul.u32 %v212, 2221713035
  %v221 = vmul.u32 %v213, 2221713035
  %v222 = vmul.u32 %v214, 2221713035
  %v223 = vmul.u32 %v215, 2221713035
  %v224 = vmul.u32 %v216, 2221713035
  %v225 = vshra.s32 %v217, 16
  %v226 = vshra.s32 %v218, 16
  %v227 = vshra.s32 %v219, 16
  %v228 = vshra.s32 %v220, 16
  %v229 = vshra.s32 %v221, 16
  %v230 = vshra.s32 %v222, 16
  %v231 = vshra.s32 %v223, 16
  %v232 = vshra.s32 %v224, 16
  %v233 = vand.u32 %v225, 65535
  %v234 = vand.u32 %v226, 65535
  %v235 = vand.u32 %v227, 65535
  %v236 = vand.u32 %v228, 65535
  %v237 = vand.u32 %v229, 65535
  %v238 = vand.u32 %v230, 65535
  %v239 = vand.u32 %v231, 65535
  %v240 = vand.u32 %v232, 65535
  %v241 = vxor.u32 %v217, %v233
  %v242 = vxor.u32 %v218, %v234
  %v243 = vxor.u32 %v219, %v235
  %v244 = vxor.u32 %v220, %v236
  %v245 = vxor.u32 %v221, %v237
  %v246 = vxor.u32 %v222, %v238
  %v247 = vxor.u32 %v223, %v239
  %v248 = vxor.u32 %v224, %v240
  %v249 = vand.u32 %v241, 16777215
  %v250 = vand.u32 %v242, 16777215
  %v251 = vand.u32 %v243, 16777215
  %v252 = vand.u32 %v244, 16777215
  %v253 = vand.u32 %v245, 16777215
  %v254 = vand.u32 %v246, 16777215
  %v255 = vand.u32 %v247, 16777215
  %v256 = vand.u32 %v248, 16777215
  %vm257 = vcmp.lt.s32.totalorder %v249, 15099494
  %vm258 = vcmp.lt.s32.totalorder %v250, 15099494
  %vm259 = vcmp.lt.s32.totalorder %v251, 15099494
  %vm260 = vcmp.lt.s32.totalorder %v252, 15099494
  %vm261 = vcmp.lt.s32.totalorder %v253, 15099494
  %vm262 = vcmp.lt.s32.totalorder %v254, 15099494
  %vm263 = vcmp.lt.s32.totalorder %v255, 15099494
  %vm264 = vcmp.lt.s32.totalorder %v256, 15099494
  %v265 = vsel %vm257, %v101, 0.0
  %v266 = vsel %vm258, %v103, 0.0
  %v267 = vsel %vm259, %v105, 0.0
  %v268 = vsel %vm260, %v107, 0.0
  %v269 = vsel %vm261, %v109, 0.0
  %v270 = vsel %vm262, %v111, 0.0
  %v271 = vsel %vm263, %v113, 0.0
  %v272 = vsel %vm264, %v115, 0.0
  %v273 = vld [vmem:[%s1] sm:$0xff]
  %v274 = vld [vmem:[%s1 + $0x8] sm:$0xff]
  %v275 = vld [vmem:[%s1 + $0x10] sm:$0xff]
  %v276 = vld [vmem:[%s1 + $0x18] sm:$0xff]
  %v277 = vld [vmem:[%s1 + $0x20] sm:$0xff]
  %v278 = vld [vmem:[%s1 + $0x28] sm:$0xff]
  %v279 = vld [vmem:[%s1 + $0x30] sm:$0xff]
  %v280 = vld [vmem:[%s1 + $0x38] sm:$0xff]
  %v281 = vmul.f32 %v265, %v273
  %v282 = vmul.f32 %v266, %v274
  %v283 = vmul.f32 %v267, %v275
  %v284 = vmul.f32 %v268, %v276
  %v285 = vmul.f32 %v269, %v277
  %v286 = vmul.f32 %v270, %v278
  %v287 = vmul.f32 %v271, %v279
  %v288 = vmul.f32 %v272, %v280
  %289 = vst.msk [vmem:[%s2] sm:$0xff] %vm19, %v281
  %290 = vst.msk [vmem:[%s2 + $0x8] sm:$0xff] %vm19, %v282
  %291 = vst.msk [vmem:[%s2 + $0x10] sm:$0xff] %vm19, %v283
  %292 = vst.msk [vmem:[%s2 + $0x18] sm:$0xff] %vm19, %v284
  %293 = vst.msk [vmem:[%s2 + $0x20] sm:$0xff] %vm19, %v285
  %294 = vst.msk [vmem:[%s2 + $0x28] sm:$0xff] %vm19, %v286
  %295 = vst.msk [vmem:[%s2 + $0x30] sm:$0xff] %vm19, %v287
  %296 = vst.msk [vmem:[%s2 + $0x38] sm:$0xff] %vm19, %v288
  // Predicated region
  $region10: #{tpu_custom_call.1} parent=0 // pred_check
    _
  $region11: #{tpu_custom_call.1} parent=0 // pred_check_branch
    %298 = sbr.rel (0) target = $region13
  $region12: #{tpu_custom_call.1} parent=0 // pred_region
    _
  $region13: #{tpu_custom_call.1} parent=0 // pred_fallthru
    _
  // Predicated region
  $region14: #{tpu_custom_call.1} parent=0 // pred_check
    _
  $region15: #{tpu_custom_call.1} parent=0 // pred_check_branch
    %300 = sbr.rel (0) target = $region17
  $region16: #{tpu_custom_call.1} parent=0 // pred_region
    _
  $region17: #{tpu_custom_call.1} parent=0 // pred_fallthru
    _

</llo_original>
